<compile_context>
chip_gen: v6e
topology: v6e:2x2x1
jax: 0.10.0
libtpu: 0.0.40
codegen_flags: <defaults>
</compile_context>

<pallas_src>
import functools
import math

import jax
import jax.numpy as jnp
from jax.experimental import pallas as pl
from jax.experimental.pallas import tpu as pltpu

_LANES = 128


def _pick_tile_rows(rows: int, row_bytes: int, min_rows: int):
    """Row-tile policy.  Returns (tile_rows, grid_steps).

      * byte budget: 2 (double-buffer) * tile_rows * row_bytes <= 8 MiB, so the
        output pipeline fits v5e's 16 MiB default scoped VMEM and leaves slack
        on v7x's smaller VMEM regardless of d_model,
      * capped at 512 rows (amortizes the ~0.35 us/step grid overhead),
      * >= 2 grid steps whenever rows >= 2*min_rows, so ("parallel",) splits
        the build across both TensorCores on v7x (no-op on 1-TC v5e/v6e),
      * partial last block via pl.cdiv instead of a single oversized tile.
    """
    budget_rows = max(min_rows, (8 << 20) // (2 * row_bytes))
    t = min(512, budget_rows)
    if rows >= 2 * min_rows:
        half = -(-rows // 2)                       # ceil(rows / 2)
        half = -(-half // min_rows) * min_rows     # round up to tile multiple
        t = min(t, half)
    t = max(min_rows, (t // min_rows) * min_rows)
    if t >= rows:
        return rows, 1                             # single full-extent block
    return t, pl.cdiv(rows, t)


def _pe_kernel(a_ref, b_ref, o_ref, *, tile_rows: int):
    """One row-tile of the PE table.

    a_ref, b_ref: (1, cols) f32 per-column slabs (precomputed, constant
    index_map) such that angle[row, col] = row * a[col] + b[col].
    o_ref: (tile_rows, cols) output tile (f32 or bf16).
    Per element: 1 mul + 1 add + 1 sin (cos via the sin(x + pi/2) identity).
    """
    i = pl.program_id(0)
    rows = o_ref.shape[0]
    row_f = (jax.lax.broadcasted_iota(jnp.int32, (rows, 1), 0)
             + i * tile_rows).astype(jnp.float32)
    o_ref[...] = jnp.sin(row_f * a_ref[...] + b_ref[...]).astype(o_ref.dtype)


@functools.lru_cache(maxsize=None)
def _build_pe_table(d_model: int, max_len: int, dtype_name: str = "float32"):
    """Build the full (1, max_len, d_model) PE buffer once (cached)."""
    dtype = jnp.dtype(dtype_name)
    scale = -math.log(10000.0) / d_model
    half_pi = math.pi / 2.0
    total = max_len * d_model

    # Lane-dense flat layout only when d_model evenly divides the 128-lane
    # vreg width (so the per-lane slabs are exact and no per-element int
    # div/mod is needed); everything else uses the natural 2-D layout.
    flat = (d_model < _LANES and _LANES % d_model == 0 and total % _LANES == 0)

    if flat:
        cols = _LANES
        rows = total // _LANES
        r = _LANES // d_model                      # positions per flat row (pow2)
        lane = jnp.arange(_LANES, dtype=jnp.int32)[None, :]
        col = lane % d_model
        div = jnp.exp((col & ~1).astype(jnp.float32) * scale)
        a = jnp.float32(r) * div                                       # (1, 128)
        b = ((lane // d_model).astype(jnp.float32) * div
             + (col & 1).astype(jnp.float32) * half_pi)                # (1, 128)
    else:
        cols = d_model
        rows = max_len
        col = jnp.arange(d_model, dtype=jnp.int32)[None, :]
        a = jnp.exp((col & ~1).astype(jnp.float32) * scale)            # div_term
        b = (col & 1).astype(jnp.float32) * half_pi                    # 0 / pi/2

    min_rows = max(8, 32 // dtype.itemsize)        # 8 for f32, 16 for bf16
    tile_rows, steps = _pick_tile_rows(rows, cols * dtype.itemsize, min_rows)

    out = pl.pallas_call(
        functools.partial(_pe_kernel, tile_rows=tile_rows),
        out_shape=jax.ShapeDtypeStruct((rows, cols), dtype),
        grid=(steps,),
        in_specs=[pl.BlockSpec((1, cols), lambda i: (0, 0)),
                  pl.BlockSpec((1, cols), lambda i: (0, 0))],
        out_specs=pl.BlockSpec((tile_rows, cols), lambda i: (i, 0)),
        compiler_params=pltpu.CompilerParams(
            dimension_semantics=("parallel",)),
    )(a.astype(jnp.float32), b.astype(jnp.float32))

    pe = out.reshape(max_len, d_model) if flat else out   # contiguous reshape
    return jax.block_until_ready(pe[None, :, :])          # torch unsqueeze(0)


def positional_embedding(x: jax.Array, d_model: int, max_len: int = 256,
                         dtype=jnp.float32) -> jax.Array:
    """Equivalent of PositionalEmbedding(d_model, max_len).forward(x).

    The table is built once per (d_model, max_len, dtype) and cached; this
    call only slices [:seq_len].  Keep the result lazy / inside jit so XLA
    fuses the downstream `x + pe` into the consumer instead of re-reading the
    table from HBM.
    """
    seq_len = x.shape[1]
    assert seq_len <= max_len, "sequence length exceeds max_len"
    assert d_model % 2 == 0, "d_model must be even (as in the torch module)"
    pe = _build_pe_table(d_model, max_len, jnp.dtype(dtype).name)
    return pe[:, :seq_len]                        # == self.pe[:, :x.size(1)]


def _reference_pe(d_model: int, max_len: int, seq_len: int) -> jnp.ndarray:
    # Pure-JAX replica of the torch __init__ buffer construction.
    pe = jnp.zeros((max_len, d_model), dtype=jnp.float32)
    position = jnp.arange(0, max_len, dtype=jnp.float32)[:, None]
    div_term = jnp.exp(
        jnp.arange(0, d_model, 2, dtype=jnp.float32) * -(math.log(10000.0) / d_model)
    )
    pe = pe.at[:, 0::2].set(jnp.sin(position * div_term))
    pe = pe.at[:, 1::2].set(jnp.cos(position * div_term))
    return pe[None, :seq_len, :]


if __name__ == "__main__":
    # small shapes: batch=2, seq=8, d_model=32
    batch, seq_len, d_model, max_len = 2, 8, 32, 256
    key = jax.random.PRNGKey(0)
    x = jax.random.normal(key, (batch, seq_len, d_model), dtype=jnp.float32)

    out = jax.block_until_ready(
        positional_embedding(x, d_model=d_model, max_len=max_len))
    ref = _reference_pe(d_model, max_len, seq_len)
    assert out.shape == (1, seq_len, d_model), out.shape
    assert out.dtype == jnp.float32
    assert jnp.allclose(out, ref, atol=2e-4, rtol=1e-5), "mismatch (flat path)"

    # second call with a different seq_len hits the cached table (no rebuild)
    out2 = jax.block_until_ready(
        positional_embedding(x[:, :4], d_model=d_model, max_len=max_len))
    assert jnp.allclose(out2, ref[:, :4], atol=2e-4, rtol=1e-5), "mismatch (cached)"

    # d_model that does not divide 128 now routes to the 2-D path (no int-div
    # heavy flat fallback).
    d2, ml2 = 48, 64
    x2 = jax.random.normal(key, (batch, seq_len, d2), dtype=jnp.float32)
    out3 = jax.block_until_ready(positional_embedding(x2, d_model=d2, max_len=ml2))
    assert jnp.allclose(out3, _reference_pe(d2, ml2, seq_len),
                        atol=2e-4, rtol=1e-5), "mismatch (2D path)"

    # consumer-dtype (bf16) table: compute in f32, cast at the store
    outb = jax.block_until_ready(
        positional_embedding(x, d_model=d_model, max_len=max_len,
                             dtype=jnp.bfloat16))
    assert outb.dtype == jnp.bfloat16
    assert jnp.allclose(outb.astype(jnp.float32), ref, atol=8e-3, rtol=0), \
        "mismatch (bf16 table)"

    print("KERNEL_OK")
</pallas_src>

<mosaic_0001>
module attributes {stable_mosaic.version = 11 : i64} {
  func.func @_pe_kernel(%arg0: i32, %arg1: memref<1x128xf32, #tpu.memory_space<vmem>>, %arg2: memref<1x128xf32, #tpu.memory_space<vmem>>, %arg3: memref<32x128xf32, #tpu.memory_space<vmem>>) attributes {dimension_semantics = [#tpu.dimension_semantics<parallel>], iteration_bounds = array<i64: 2>, scalar_prefetch = 0 : i64, scratch_operands = 0 : i64, tpu.core_type = #tpu.core_type<tc>, window_params = [{pipeline_mode = #tpu.pipeline_mode<synchronous>, transform_indices = @transform_0, window_bounds = array<i64: 1, 128>}, {pipeline_mode = #tpu.pipeline_mode<synchronous>, transform_indices = @transform_1, window_bounds = array<i64: 1, 128>}, {transform_indices = @transform_2, window_bounds = array<i64: 32, 128>}]} {
    %0 = tpu.iota {dimensions = array<i32: 0>} : vector<32x1xi32>
    %c32_i32 = arith.constant 32 : i32
    %1 = arith.muli %arg0, %c32_i32 : i32
    %2 = vector.broadcast %1 : i32 to vector<32x1xi32>
    %3 = arith.addi %0, %2 : vector<32x1xi32>
    %4 = arith.sitofp %3 : vector<32x1xi32> to vector<32x1xf32>
    %c0 = arith.constant 0 : index
    %c0_0 = arith.constant 0 : index
    %5 = vector.load %arg1[%c0, %c0_0] : memref<1x128xf32, #tpu.memory_space<vmem>>, vector<1x128xf32>
    %6 = vector.broadcast %4 : vector<32x1xf32> to vector<32x128xf32>
    %7 = vector.broadcast %5 : vector<1x128xf32> to vector<32x128xf32>
    %8 = arith.mulf %6, %7 : vector<32x128xf32>
    %c0_1 = arith.constant 0 : index
    %c0_2 = arith.constant 0 : index
    %9 = vector.load %arg2[%c0_1, %c0_2] : memref<1x128xf32, #tpu.memory_space<vmem>>, vector<1x128xf32>
    %10 = vector.broadcast %9 : vector<1x128xf32> to vector<32x128xf32>
    %11 = arith.addf %8, %10 : vector<32x128xf32>
    %12 = math.sin %11 : vector<32x128xf32>
    %c0_3 = arith.constant 0 : index
    %c0_4 = arith.constant 0 : index
    %13 = vector.load %arg3[%c0_3, %c0_4] : memref<32x128xf32, #tpu.memory_space<vmem>>, vector<32x128xf32>
    tpu.vector_store %arg3[%c0_3, %c0_4], %12 {strides = array<i32>} : memref<32x128xf32, #tpu.memory_space<vmem>>, vector<32x128xf32>,
    return
  }
  func.func @transform_0(%arg0: i32) -> (i32, i32) {
    %c0_i32 = arith.constant 0 : i32
    %c0_i32_0 = arith.constant 0 : i32
    %c0_i32_1 = arith.constant 0 : i32
    return %c0_i32, %c0_i32_0 : i32, i32
  }
  func.func @transform_1(%arg0: i32) -> (i32, i32) {
    %c0_i32 = arith.constant 0 : i32
    %c0_i32_0 = arith.constant 0 : i32
    %c0_i32_1 = arith.constant 0 : i32
    return %c0_i32, %c0_i32_0 : i32, i32
  }
  func.func @transform_2(%arg0: i32) -> (i32, i32) {
    %c0_i32 = arith.constant 0 : i32
    %c0_i32_0 = arith.constant 0 : i32
    return %arg0, %c0_i32 : i32, i32
  }
}

</mosaic_0001>

<llo_original>
// kernel: tpu_custom_call.1
$region0: #{tpu_custom_call.1}
  #allocation0 [shape = 'u32[]', space=smem, size = 0x4, offset = 0x4, fixed_abs, tag = 'smem constant byte address 0x4 - core index']
  #allocation1 [shape = 'u32[144,128]{1,0:T(1,128)}', space=vmem, size = 0x12000, scoped, tag = 'internal scratch']
  %s0 = inlined_call_operand.hbm [shape: f32[1,128], index: 0, kind: input, shape index: {}]
  %s1 = inlined_call_operand.vmem [shape: f32[1,128], index: 1, kind: input, shape index: {}]
  %s2 = inlined_call_operand.hbm [shape: f32[64,128], index: 2, kind: output, shape index: {}]
  %s3 = sld [smem:[#allocation0]]
  $region45: #{tpu_custom_call.1} parent=0
    _
  %s5 = ssub.s32 1, %s3
  %s6 = scalar_select 0, %s5, %s3
  $region1: #{tpu_custom_call.1} parent=0
    #allocation2 [shape = 'u8[512]{0}', space=vmem, size = 0x400, scoped, tag = 'input window, operand 0, single buffered']
    #allocation3 [shape = 's32[2]{0}', space=sflag, size = 0x8, scoped, tag = 'scoped memory for tpu_custom_call.1']
    #allocation4 [shape = 's32[2]{0}', space=sflag, size = 0x8, scoped, tag = 'scoped memory for tpu_custom_call.1']
    #allocation5 [shape = 'u8[32768]{0}', space=vmem, size = 0x8000, scoped, tag = 'output window, operand 0']
    %7 = vsyncpa [#allocation3], 0
    %8 = vsyncpa [#allocation4], 0
    %s9 = scalar_lea.sflag [#allocation4], 1
    %10 = vsyncpa %s9, 0
    loop: start=0, step=1, limit=4
    $region2: #{tpu_custom_call.1} parent=1 // loop_pre_header
      _
    $region3: #{tpu_custom_call.1} parent=1 // loop_header
      %s12 = sphi 0, %s16
      %p13 = scmp.ge.s32.totalorder %s12, 4
      %s20 = sphi 0, %s20
      %s22 = sphi 0, %s20
      %s23 = sphi 0, %s22
      %s37 = sphi 0, %s23
      %s41 = sphi 0, %s41
      %s43 = sphi 0, %s41
      %s44 = sphi 0, %s43
      %s58 = sphi 0, %s44
      %s64 = sphi 0, %s66
      %s67 = sphi 0, %s64
      %s68 = sphi 0, %s67
      %s84 = sphi 0, %s68
    $region4: #{tpu_custom_call.1} parent=1 // loop_header_branch
      %15 = sbr.rel (%p13) target = $region8
    $region5: #{tpu_custom_call.1} parent=1 // loop_body
      %s17 = ssub.s32 %s12, 1
      %s18 = ssub.s32 %s12, 2
      %s19 = sadd.s32 %s12, 1
      %s21 = sadd.s32 %s20, 1
      %p24 = scmp.eq.s32.totalorder %s12, 1
      %p25 = scmp.ne.s32.totalorder %s20, %s22
      %p26 = scmp.eq.s32.totalorder %s12, 0
      %p27 = por %p25, %p26
      %p28 = scmp.ne.s32.totalorder %s20, %s22
      %p29 = scmp.eq.s32.totalorder %s17, 1
      %p30 = por %p28, %p29
      %p31 = scmp.ne.s32.totalorder %s22, %s23
      %p32 = scmp.eq.s32.totalorder %s17, 0
      %p33 = por %p31, %p32
      %p34 = scmp.ne.s32.totalorder %s22, %s23
      %p35 = scmp.eq.s32.totalorder %s18, 1
      %p36 = por %p34, %p35
      %p38 = scmp.ne.s32.totalorder %s23, %s37
      %p39 = scmp.eq.s32.totalorder %s18, 0
      %p40 = por %p38, %p39
      %s42 = sadd.s32 %s41, 1
      %p45 = scmp.eq.s32.totalorder %s12, 1
      %p46 = scmp.ne.s32.totalorder %s41, %s43
      %p47 = scmp.eq.s32.totalorder %s12, 0
      %p48 = por %p46, %p47
      %p49 = scmp.ne.s32.totalorder %s41, %s43
      %p50 = scmp.eq.s32.totalorder %s17, 1
      %p51 = por %p49, %p50
      %p52 = scmp.ne.s32.totalorder %s43, %s44
      %p53 = scmp.eq.s32.totalorder %s17, 0
      %p54 = por %p52, %p53
      %p55 = scmp.ne.s32.totalorder %s43, %s44
      %p56 = scmp.eq.s32.totalorder %s18, 1
      %p57 = por %p55, %p56
      %p59 = scmp.ne.s32.totalorder %s44, %s58
      %p60 = scmp.eq.s32.totalorder %s18, 0
      %p61 = por %p59, %p60
      %s62 = ssub.s32 %s12, %s19
      %p63 = scmp.eq.s32.totalorder %s62, 0
      %s65 = sadd.s32 %s64, 1
      %s66 = scalar_select %p63, %s64, %s65
      %p69 = pneg %p63
      %p70 = scmp.eq.s32.totalorder %s12, 1
      %p71 = por %p69, %p70
      %p72 = scmp.ne.s32.totalorder %s64, %s67
      %p73 = scmp.eq.s32.totalorder %s12, 0
      %p74 = por %p72, %p73
      %p75 = scmp.ne.s32.totalorder %s64, %s67
      %p76 = scmp.eq.s32.totalorder %s17, 1
      %p77 = por %p75, %p76
      %p78 = scmp.ne.s32.totalorder %s67, %s68
      %p79 = scmp.eq.s32.totalorder %s17, 0
      %p80 = por %p78, %p79
      %p81 = scmp.ne.s32.totalorder %s67, %s68
      %p82 = scmp.eq.s32.totalorder %s18, 1
      %p83 = por %p81, %p82
      %p85 = scmp.ne.s32.totalorder %s68, %s84
      %p86 = scmp.eq.s32.totalorder %s18, 0
      %p87 = por %p85, %p86
      %p88 = scmp.le.s32.totalorder 1, %s12
      %p89 = scmp.lt.s32.totalorder %s12, 3
      %p90 = pnand %p88, %p89
      %p91 = pneg %p90
      // Predicated region
      $region9: #{tpu_custom_call.1} parent=5 // pred_check
        _
      $region10: #{tpu_custom_call.1} parent=5 // pred_check_branch
        %93 = sbr.rel (%p90) target = $region12
      $region11: #{tpu_custom_call.1} parent=5 // pred_region
        %s94 = ssub.s32 %s12, 1
        // Predicated region
        $region13: #{tpu_custom_call.1} parent=11 // pred_check
          %p95 = pneg %p33
        $region14: #{tpu_custom_call.1} parent=11 // pred_check_branch
          %97 = sbr.rel (%p95) target = $region16
        $region15: #{tpu_custom_call.1} parent=11 // pred_region
          %s99 = ssub.s32 16, 16
          %100 = vsyncadd [#allocation3], %s99
          %s102 = sshll.u32 [#allocation2], 4
          %s103 = int_to_ptr.vmem [resolvable:$true] %s102
          %105 = dma.hbm_to_vmem [thread:$0]  %s0, 16, %s103, [#allocation3]
        $region16: #{tpu_custom_call.1} parent=11 // pred_fallthru
          _
        // Predicated region
        $region17: #{tpu_custom_call.1} parent=11 // pred_check
          %p106 = pneg %p54
        $region18: #{tpu_custom_call.1} parent=11 // pred_check_branch
          %108 = sbr.rel (%p106) target = $region20
        $region19: #{tpu_custom_call.1} parent=11 // pred_region
          _
        $region20: #{tpu_custom_call.1} parent=11 // pred_fallthru
          _
      $region12: #{tpu_custom_call.1} parent=5 // pred_fallthru
        _
      %p109 = scmp.lt.s32.totalorder %s12, 2
      // Predicated region
      $region21: #{tpu_custom_call.1} parent=5 // pred_check
        %p110 = pneg %p109
      $region22: #{tpu_custom_call.1} parent=5 // pred_check_branch
        %112 = sbr.rel (%p110) target = $region24
      $region23: #{tpu_custom_call.1} parent=5 // pred_region
        _
      $region24: #{tpu_custom_call.1} parent=5 // pred_fallthru
        _
      %p113 = scmp.le.s32.totalorder 1, %s12
      %p114 = scmp.lt.s32.totalorder %s12, 3
      %p115 = pnand %p113, %p114
      %p116 = pneg %p115
      // Predicated region
      $region25: #{tpu_custom_call.1} parent=5 // pred_check
        _
      $region26: #{tpu_custom_call.1} parent=5 // pred_check_branch
        %118 = sbr.rel (%p115) target = $region28
      $region27: #{tpu_custom_call.1} parent=5 // pred_region
        %s119 = ssub.s32 %s12, 1
        // Predicated region
        $region29: #{tpu_custom_call.1} parent=27 // pred_check
          %p120 = pneg %p33
        $region30: #{tpu_custom_call.1} parent=27 // pred_check_branch
          %122 = sbr.rel (%p120) target = $region32
        $region31: #{tpu_custom_call.1} parent=27 // pred_region
          %123 = dma.done [#allocation3], 16
        $region32: #{tpu_custom_call.1} parent=27 // pred_fallthru
          _
        %p124 = pneg %p33
        %p125 = pneg %p30
        %p126 = pneg %p54
        %p127 = pneg %p51
        %p128 = pneg %p80
        %p129 = pneg %p77
        %s130 = sand.u32 %s67, 1
        %s131 = scalar_lea.sflag [#allocation4], %s130
        %s132 = sand.u32 %s67, 1
        %s133 = smul.addr %s132, 32
        %s134 = scalar_lea.vmem [#allocation5], %s133
        %s135 = smul.u32 4, %s17
        %v136 = vlaneseq
        %v137 = vshrl.u32 %v136, 7
        %v138 = vadd.s32 %v137, 8
        %v139 = vadd.s32 %v137, 16
        %v140 = vadd.s32 %v137, 24
        %s141 = smul.u32 %s17, 32
        %v142 = vstv %s141
        %v143 = vadd.s32 %v137, %v142
        %v144 = vadd.s32 %v138, %v142
        %v145 = vadd.s32 %v139, %v142
        %v146 = vadd.s32 %v140, %v142
        %v147 = vcvt.s32.f32 %v143
        %v148 = vcvt.s32.f32 %v144
        %v149 = vcvt.s32.f32 %v145
        %v150 = vcvt.s32.f32 %v146
        %v151 = vld [vmem:[#allocation2] sm:$0x1]
        %v153 = vlaneseq
        %v154 = vshrl.u32 %v153, 7
        %v155 = vsub.s32 0, %v154
        %v156 = vrot.slane %v151, %v155
        %v158 = vmul.f32 %v147, %v156
        %v159 = vmul.f32 %v148, %v156
        %v160 = vmul.f32 %v149, %v156
        %v161 = vmul.f32 %v150, %v156
        %v162 = vld [vmem:[%s1] sm:$0x1]
        %v164 = vlaneseq
        %v165 = vshrl.u32 %v164, 7
        %v166 = vsub.s32 0, %v165
        %v167 = vrot.slane %v162, %v166
        %v169 = vadd.f32 %v158, %v167
        %v170 = vadd.f32 %v159, %v167
        %v171 = vadd.f32 %v160, %v167
        %v172 = vadd.f32 %v161, %v167
        %v173 = vand.u32 2147483647, %v169
        %vm174 = vcmp.le.f32.partialorder %v173, 0.7853982
        %vm175 = vcmp.lt.s32.totalorder %v169, 0
        %v176 = vand.u32 %v169, 2139095040
        %v177 = vshrl.u32 %v176, 23
        %v178 = vsub.s32 %v177, 127
        %v179 = vand.u32 2147483647, %v169
        %v180 = vand.u32 %v179, 8388607
        %v181 = vor.u32 %v180, 8388608
        %v182 = vsub.s32 0, %v181
        %v183 = vadd.s32 %v178, 1
        %vm184 = vcmp.gt.s32.totalorder %v183, 0
        %v185 = vsel %vm184, %v183, 0
        %v186 = vshrl.u32 %v185, 5
        %v187 = vand.u32 %v185, 31
        %v188 = vsub.s32 32, %v187
        %v189 = vshrl.u32 683565275, %v188
        %v190 = vshll.u32 683565275, %v187
        %v191 = vshrl.u32 2475754826, %v188
        %v192 = vor.u32 %v190, %v191
        %v193 = vshll.u32 2475754826, %v187
        %v194 = vshrl.u32 2131351028, %v188
        %v195 = vor.u32 %v193, %v194
        %v196 = vshll.u32 2131351028, %v187
        %v197 = vshrl.u32 2102212464, %v188
        %v198 = vor.u32 %v196, %v197
        %v199 = vshll.u32 2102212464, %v187
        %v200 = vshrl.u32 920167782, %v188
        %v201 = vor.u32 %v199, %v200
        %v202 = vshll.u32 920167782, %v187
        %v203 = vshrl.u32 1326507024, %v188
        %v204 = vor.u32 %v202, %v203
        %vm205 = vcmp.lt.s32.totalorder %v186, 1
        %vm206 = vcmp.lt.s32.totalorder %v186, 2
        %vm207 = vcmp.lt.s32.totalorder %v186, 3
        %vm208 = vcmp.lt.s32.totalorder %v186, 4
        %v209 = vsel %vm205, %v189, %v192
        %v210 = vsel %vm208, %v198, 2102212464
        %v211 = vsel %vm207, %v195, %v210
        %v212 = vsel %vm206, %v209, %v211
        %v213 = vsel %vm205, %v192, %v195
        %v214 = vsel %vm208, %v201, 920167782
        %v215 = vsel %vm207, %v198, %v214
        %v216 = vsel %vm206, %v213, %v215
        %v217 = vsel %vm205, %v195, %v198
        %v218 = vsel %vm208, %v204, 1326507024
        %v219 = vsel %vm207, %v201, %v218
        %v220 = vsel %vm206, %v217, %v219
        %v221 = vshll.u32 %v181, 8
        %v222 = vmul.u32.u64.compose %v221, %v220
        %v223 = vextract.low.u32 %v222
        %v224 = vextract.high.u32 %v222
        %v225 = vmul.u32.u64.compose %v221, %v216
        %v226 = vextract.low.u32 %v225
        %v227 = vextract.high.u32 %v225
        %v228 = vmul.u32 %v221, %v212
        %v229 = vadd.s32 %v224, %v226
        %vm230 = vc.u32 %v224, %v226
        %v231 = vadd.s32 %v227, 1
        %v232 = vsel %vm230, %v231, %v227
        %v233 = vadd.s32 %v228, %v232
        %v234 = vadd.s32 %v233, 536870912
        %v235 = vshrl.u32 %v234, 30
        %v236 = vshll.u32 %v235, 30
        %v237 = vsub.s32 %v233, %v236
        %vm238 = vcmp.lt.s32.totalorder %v237, 0
        %v239 = vsub.s32 0, %v237
        %v240 = vsel %vm238, %v239, %v237
        %v241 = vclz %v240
        %v242 = vsub.s32 %v241, 2
        %vm243 = vcmp.gt.s32.totalorder 0, %v242
        %v244 = vsel %vm243, 0, %v242
        %v245 = vsub.s32 32, %v244
        %v246 = vshll.u32 %v237, %v244
        %v247 = vshrl.u32 %v229, %v245
        %v248 = vor.u32 %v246, %v247
        %v249 = vsub.s32 4294967266, %v244
        %v250 = vadd.s32 %v249, 127
        %v251 = vshll.u32 %v250, 23
        %v252 = vor.u32 4788187, %v251
        %v253 = vand.u32 2147483647, %v252
        %v255 = vcvt.s32.f32 %v248
        %v256 = vmul.f32 %v255, %v253
        %v257 = vxor.u32 %v256, 2147483648
        %v258 = vsel %vm175, %v257, %v256
        %v259 = vsub.s32 4, %v235
        %v260 = vsel %vm175, %v259, %v235
        %v261 = vsel %vm174, %v169, %v258
        %v262 = vsel %vm174, 0, %v260
        %v263 = vcosq.f32.pop %v261
        %v264 = vsinq.f32.pop %v261
        %vm265 = vweird.f32 %v169
        %v266 = vadd.s32 %v262, 3
        %v267 = vand.u32 %v266, 3
        %vm268 = vcmp.lt.s32.totalorder %v267, 2
        %vm269 = vcmp.eq.s32.totalorder %v267, 0
        %v270 = vxor.u32 %v264, 2147483648
        %v271 = vsel %vm269, %v263, %v270
        %vm272 = vcmp.eq.s32.totalorder %v267, 2
        %v273 = vxor.u32 %v263, 2147483648
        %v274 = vsel %vm272, %v273, %v264
        %v275 = vsel %vm268, %v271, %v274
        %v276 = vsel %vm265, nan, %v275
        %v277 = vand.u32 2147483647, %v170
        %vm278 = vcmp.le.f32.partialorder %v277, 0.7853982
        %vm279 = vcmp.lt.s32.totalorder %v170, 0
        %v280 = vand.u32 %v170, 2139095040
        %v281 = vshrl.u32 %v280, 23
        %v282 = vsub.s32 %v281, 127
        %v283 = vand.u32 2147483647, %v170
        %v284 = vand.u32 %v283, 8388607
        %v285 = vor.u32 %v284, 8388608
        %v286 = vsub.s32 0, %v285
        %v287 = vadd.s32 %v282, 1
        %vm288 = vcmp.gt.s32.totalorder %v287, 0
        %v289 = vsel %vm288, %v287, 0
        %v290 = vshrl.u32 %v289, 5
        %v291 = vand.u32 %v289, 31
        %v292 = vsub.s32 32, %v291
        %v293 = vshrl.u32 683565275, %v292
        %v294 = vshll.u32 683565275, %v291
        %v295 = vshrl.u32 2475754826, %v292
        %v296 = vor.u32 %v294, %v295
        %v297 = vshll.u32 2475754826, %v291
        %v298 = vshrl.u32 2131351028, %v292
        %v299 = vor.u32 %v297, %v298
        %v300 = vshll.u32 2131351028, %v291
        %v301 = vshrl.u32 2102212464, %v292
        %v302 = vor.u32 %v300, %v301
        %v303 = vshll.u32 2102212464, %v291
        %v304 = vshrl.u32 920167782, %v292
        %v305 = vor.u32 %v303, %v304
        %v306 = vshll.u32 920167782, %v291
        %v307 = vshrl.u32 1326507024, %v292
        %v308 = vor.u32 %v306, %v307
        %vm309 = vcmp.lt.s32.totalorder %v290, 1
        %vm310 = vcmp.lt.s32.totalorder %v290, 2
        %vm311 = vcmp.lt.s32.totalorder %v290, 3
        %vm312 = vcmp.lt.s32.totalorder %v290, 4
        %v313 = vsel %vm309, %v293, %v296
        %v314 = vsel %vm312, %v302, 2102212464
        %v315 = vsel %vm311, %v299, %v314
        %v316 = vsel %vm310, %v313, %v315
        %v317 = vsel %vm309, %v296, %v299
        %v318 = vsel %vm312, %v305, 920167782
        %v319 = vsel %vm311, %v302, %v318
        %v320 = vsel %vm310, %v317, %v319
        %v321 = vsel %vm309, %v299, %v302
        %v322 = vsel %vm312, %v308, 1326507024
        %v323 = vsel %vm311, %v305, %v322
        %v324 = vsel %vm310, %v321, %v323
        %v325 = vshll.u32 %v285, 8
        %v326 = vmul.u32.u64.compose %v325, %v324
        %v327 = vextract.low.u32 %v326
        %v328 = vextract.high.u32 %v326
        %v329 = vmul.u32.u64.compose %v325, %v320
        %v330 = vextract.low.u32 %v329
        %v331 = vextract.high.u32 %v329
        %v332 = vmul.u32 %v325, %v316
        %v333 = vadd.s32 %v328, %v330
        %vm334 = vc.u32 %v328, %v330
        %v335 = vadd.s32 %v331, 1
        %v336 = vsel %vm334, %v335, %v331
        %v337 = vadd.s32 %v332, %v336
        %v338 = vadd.s32 %v337, 536870912
        %v339 = vshrl.u32 %v338, 30
        %v340 = vshll.u32 %v339, 30
        %v341 = vsub.s32 %v337, %v340
        %vm342 = vcmp.lt.s32.totalorder %v341, 0
        %v343 = vsub.s32 0, %v341
        %v344 = vsel %vm342, %v343, %v341
        %v345 = vclz %v344
        %v346 = vsub.s32 %v345, 2
        %vm347 = vcmp.gt.s32.totalorder 0, %v346
        %v348 = vsel %vm347, 0, %v346
        %v349 = vsub.s32 32, %v348
        %v350 = vshll.u32 %v341, %v348
        %v351 = vshrl.u32 %v333, %v349
        %v352 = vor.u32 %v350, %v351
        %v353 = vsub.s32 4294967266, %v348
        %v354 = vadd.s32 %v353, 127
        %v355 = vshll.u32 %v354, 23
        %v356 = vor.u32 4788187, %v355
        %v357 = vand.u32 2147483647, %v356
        %v359 = vcvt.s32.f32 %v352
        %v360 = vmul.f32 %v359, %v357
        %v361 = vxor.u32 %v360, 2147483648
        %v362 = vsel %vm279, %v361, %v360
        %v363 = vsub.s32 4, %v339
        %v364 = vsel %vm279, %v363, %v339
        %v365 = vsel %vm278, %v170, %v362
        %v366 = vsel %vm278, 0, %v364
        %v367 = vcosq.f32.pop %v365
        %v368 = vsinq.f32.pop %v365
        %vm369 = vweird.f32 %v170
        %v370 = vadd.s32 %v366, 3
        %v371 = vand.u32 %v370, 3
        %vm372 = vcmp.lt.s32.totalorder %v371, 2
        %vm373 = vcmp.eq.s32.totalorder %v371, 0
        %v374 = vxor.u32 %v368, 2147483648
        %v375 = vsel %vm373, %v367, %v374
        %vm376 = vcmp.eq.s32.totalorder %v371, 2
        %v377 = vxor.u32 %v367, 2147483648
        %v378 = vsel %vm376, %v377, %v368
        %v379 = vsel %vm372, %v375, %v378
        %v380 = vsel %vm369, nan, %v379
        %v381 = vand.u32 2147483647, %v171
        %vm382 = vcmp.le.f32.partialorder %v381, 0.7853982
        %vm383 = vcmp.lt.s32.totalorder %v171, 0
        %v384 = vand.u32 %v171, 2139095040
        %v385 = vshrl.u32 %v384, 23
        %v386 = vsub.s32 %v385, 127
        %v387 = vand.u32 2147483647, %v171
        %v388 = vand.u32 %v387, 8388607
        %v389 = vor.u32 %v388, 8388608
        %v390 = vsub.s32 0, %v389
        %v391 = vadd.s32 %v386, 1
        %vm392 = vcmp.gt.s32.totalorder %v391, 0
        %v393 = vsel %vm392, %v391, 0
        %v394 = vshrl.u32 %v393, 5
        %v395 = vand.u32 %v393, 31
        %v396 = vsub.s32 32, %v395
        %v397 = vshrl.u32 683565275, %v396
        %v398 = vshll.u32 683565275, %v395
        %v399 = vshrl.u32 2475754826, %v396
        %v400 = vor.u32 %v398, %v399
        %v401 = vshll.u32 2475754826, %v395
        %v402 = vshrl.u32 2131351028, %v396
        %v403 = vor.u32 %v401, %v402
        %v404 = vshll.u32 2131351028, %v395
        %v405 = vshrl.u32 2102212464, %v396
        %v406 = vor.u32 %v404, %v405
        %v407 = vshll.u32 2102212464, %v395
        %v408 = vshrl.u32 920167782, %v396
        %v409 = vor.u32 %v407, %v408
        %v410 = vshll.u32 920167782, %v395
        %v411 = vshrl.u32 1326507024, %v396
        %v412 = vor.u32 %v410, %v411
        %vm413 = vcmp.lt.s32.totalorder %v394, 1
        %vm414 = vcmp.lt.s32.totalorder %v394, 2
        %vm415 = vcmp.lt.s32.totalorder %v394, 3
        %vm416 = vcmp.lt.s32.totalorder %v394, 4
        %v417 = vsel %vm413, %v397, %v400
        %v418 = vsel %vm416, %v406, 2102212464
        %v419 = vsel %vm415, %v403, %v418
        %v420 = vsel %vm414, %v417, %v419
        %v421 = vsel %vm413, %v400, %v403
        %v422 = vsel %vm416, %v409, 920167782
        %v423 = vsel %vm415, %v406, %v422
        %v424 = vsel %vm414, %v421, %v423
        %v425 = vsel %vm413, %v403, %v406
        %v426 = vsel %vm416, %v412, 1326507024
        %v427 = vsel %vm415, %v409, %v426
        %v428 = vsel %vm414, %v425, %v427
        %v429 = vshll.u32 %v389, 8
        %v430 = vmul.u32.u64.compose %v429, %v428
        %v431 = vextract.low.u32 %v430
        %v432 = vextract.high.u32 %v430
        %v433 = vmul.u32.u64.compose %v429, %v424
        %v434 = vextract.low.u32 %v433
        %v435 = vextract.high.u32 %v433
        %v436 = vmul.u32 %v429, %v420
        %v437 = vadd.s32 %v432, %v434
        %vm438 = vc.u32 %v432, %v434
        %v439 = vadd.s32 %v435, 1
        %v440 = vsel %vm438, %v439, %v435
        %v441 = vadd.s32 %v436, %v440
        %v442 = vadd.s32 %v441, 536870912
        %v443 = vshrl.u32 %v442, 30
        %v444 = vshll.u32 %v443, 30
        %v445 = vsub.s32 %v441, %v444
        %vm446 = vcmp.lt.s32.totalorder %v445, 0
        %v447 = vsub.s32 0, %v445
        %v448 = vsel %vm446, %v447, %v445
        %v449 = vclz %v448
        %v450 = vsub.s32 %v449, 2
        %vm451 = vcmp.gt.s32.totalorder 0, %v450
        %v452 = vsel %vm451, 0, %v450
        %v453 = vsub.s32 32, %v452
        %v454 = vshll.u32 %v445, %v452
        %v455 = vshrl.u32 %v437, %v453
        %v456 = vor.u32 %v454, %v455
        %v457 = vsub.s32 4294967266, %v452
        %v458 = vadd.s32 %v457, 127
        %v459 = vshll.u32 %v458, 23
        %v460 = vor.u32 4788187, %v459
        %v461 = vand.u32 2147483647, %v460
        %v463 = vcvt.s32.f32 %v456
        %v464 = vmul.f32 %v463, %v461
        %v465 = vxor.u32 %v464, 2147483648
        %v466 = vsel %vm383, %v465, %v464
        %v467 = vsub.s32 4, %v443
        %v468 = vsel %vm383, %v467, %v443
        %v469 = vsel %vm382, %v171, %v466
        %v470 = vsel %vm382, 0, %v468
        %v471 = vcosq.f32.pop %v469
        %v472 = vsinq.f32.pop %v469
        %vm473 = vweird.f32 %v171
        %v474 = vadd.s32 %v470, 3
        %v475 = vand.u32 %v474, 3
        %vm476 = vcmp.lt.s32.totalorder %v475, 2
        %vm477 = vcmp.eq.s32.totalorder %v475, 0
        %v478 = vxor.u32 %v472, 2147483648
        %v479 = vsel %vm477, %v471, %v478
        %vm480 = vcmp.eq.s32.totalorder %v475, 2
        %v481 = vxor.u32 %v471, 2147483648
        %v482 = vsel %vm480, %v481, %v472
        %v483 = vsel %vm476, %v479, %v482
        %v484 = vsel %vm473, nan, %v483
        %v485 = vand.u32 2147483647, %v172
        %vm486 = vcmp.le.f32.partialorder %v485, 0.7853982
        %vm487 = vcmp.lt.s32.totalorder %v172, 0
        %v488 = vand.u32 %v172, 2139095040
        %v489 = vshrl.u32 %v488, 23
        %v490 = vsub.s32 %v489, 127
        %v491 = vand.u32 2147483647, %v172
        %v492 = vand.u32 %v491, 8388607
        %v493 = vor.u32 %v492, 8388608
        %v494 = vsub.s32 0, %v493
        %v495 = vadd.s32 %v490, 1
        %vm496 = vcmp.gt.s32.totalorder %v495, 0
        %v497 = vsel %vm496, %v495, 0
        %v498 = vshrl.u32 %v497, 5
        %v499 = vand.u32 %v497, 31
        %v500 = vsub.s32 32, %v499
        %v501 = vshrl.u32 683565275, %v500
        %v502 = vshll.u32 683565275, %v499
        %v503 = vshrl.u32 2475754826, %v500
        %v504 = vor.u32 %v502, %v503
        %v505 = vshll.u32 2475754826, %v499
        %v506 = vshrl.u32 2131351028, %v500
        %v507 = vor.u32 %v505, %v506
        %v508 = vshll.u32 2131351028, %v499
        %v509 = vshrl.u32 2102212464, %v500
        %v510 = vor.u32 %v508, %v509
        %v511 = vshll.u32 2102212464, %v499
        %v512 = vshrl.u32 920167782, %v500
        %v513 = vor.u32 %v511, %v512
        %v514 = vshll.u32 920167782, %v499
        %v515 = vshrl.u32 1326507024, %v500
        %v516 = vor.u32 %v514, %v515
        %vm517 = vcmp.lt.s32.totalorder %v498, 1
        %vm518 = vcmp.lt.s32.totalorder %v498, 2
        %vm519 = vcmp.lt.s32.totalorder %v498, 3
        %vm520 = vcmp.lt.s32.totalorder %v498, 4
        %v521 = vsel %vm517, %v501, %v504
        %v522 = vsel %vm520, %v510, 2102212464
        %v523 = vsel %vm519, %v507, %v522
        %v524 = vsel %vm518, %v521, %v523
        %v525 = vsel %vm517, %v504, %v507
        %v526 = vsel %vm520, %v513, 920167782
        %v527 = vsel %vm519, %v510, %v526
        %v528 = vsel %vm518, %v525, %v527
        %v529 = vsel %vm517, %v507, %v510
        %v530 = vsel %vm520, %v516, 1326507024
        %v531 = vsel %vm519, %v513, %v530
        %v532 = vsel %vm518, %v529, %v531
        %v533 = vshll.u32 %v493, 8
        %v534 = vmul.u32.u64.compose %v533, %v532
        %v535 = vextract.low.u32 %v534
        %v536 = vextract.high.u32 %v534
        %v537 = vmul.u32.u64.compose %v533, %v528
        %v538 = vextract.low.u32 %v537
        %v539 = vextract.high.u32 %v537
        %v540 = vmul.u32 %v533, %v524
        %v541 = vadd.s32 %v536, %v538
        %vm542 = vc.u32 %v536, %v538
        %v543 = vadd.s32 %v539, 1
        %v544 = vsel %vm542, %v543, %v539
        %v545 = vadd.s32 %v540, %v544
        %v546 = vadd.s32 %v545, 536870912
        %v547 = vshrl.u32 %v546, 30
        %v548 = vshll.u32 %v547, 30
        %v549 = vsub.s32 %v545, %v548
        %vm550 = vcmp.lt.s32.totalorder %v549, 0
        %v551 = vsub.s32 0, %v549
        %v552 = vsel %vm550, %v551, %v549
        %v553 = vclz %v552
        %v554 = vsub.s32 %v553, 2
        %vm555 = vcmp.gt.s32.totalorder 0, %v554
        %v556 = vsel %vm555, 0, %v554
        %v557 = vsub.s32 32, %v556
        %v558 = vshll.u32 %v549, %v556
        %v559 = vshrl.u32 %v541, %v557
        %v560 = vor.u32 %v558, %v559
        %v561 = vsub.s32 4294967266, %v556
        %v562 = vadd.s32 %v561, 127
        %v563 = vshll.u32 %v562, 23
        %v564 = vor.u32 4788187, %v563
        %v565 = vand.u32 2147483647, %v564
        %v567 = vcvt.s32.f32 %v560
        %v568 = vmul.f32 %v567, %v565
        %v569 = vxor.u32 %v568, 2147483648
        %v570 = vsel %vm487, %v569, %v568
        %v571 = vsub.s32 4, %v547
        %v572 = vsel %vm487, %v571, %v547
        %v573 = vsel %vm486, %v172, %v570
        %v574 = vsel %vm486, 0, %v572
        %v575 = vcosq.f32.pop %v573
        %v576 = vsinq.f32.pop %v573
        %vm577 = vweird.f32 %v172
        %v578 = vadd.s32 %v574, 3
        %v579 = vand.u32 %v578, 3
        %vm580 = vcmp.lt.s32.totalorder %v579, 2
        %vm581 = vcmp.eq.s32.totalorder %v579, 0
        %v582 = vxor.u32 %v576, 2147483648
        %v583 = vsel %vm581, %v575, %v582
        %vm584 = vcmp.eq.s32.totalorder %v579, 2
        %v585 = vxor.u32 %v575, 2147483648
        %v586 = vsel %vm584, %v585, %v576
        %v587 = vsel %vm580, %v583, %v586
        %v588 = vsel %vm577, nan, %v587
        %589 = vst [vmem:[%s134] sm:$0xff] %v276
        %590 = vst [vmem:[%s134 + $0x8] sm:$0xff] %v380
        %591 = vst [vmem:[%s134 + $0x10] sm:$0xff] %v484
        %592 = vst [vmem:[%s134 + $0x18] sm:$0xff] %v588
        %s593 = sand.u32 %s67, 1
        %s594 = scalar_lea.sflag [#allocation4], %s593
        %s595 = sand.u32 %s67, 1
        %s596 = smul.addr %s595, 32
        %s597 = scalar_lea.vmem [#allocation5], %s596
        // Predicated region
        $region33: #{tpu_custom_call.1} parent=27 // pred_check
          %p598 = pneg %p77
        $region34: #{tpu_custom_call.1} parent=27 // pred_check_branch
          %600 = sbr.rel (%p598) target = $region36
        $region35: #{tpu_custom_call.1} parent=27 // pred_region
          %s601 = smul.u32 4, %s17
          %s603 = ssub.s32 512, 512
          %604 = vsyncadd %s594, %s603
          %s605 = smul.addr %s601, 128
          %s606 = scalar_lea.hbm %s2, %s605
          %s607 = sshll.u32 %s597, 4
          %s608 = int_to_ptr.vmem [resolvable:$true] %s607
          %613 = dma.vmem_to_hbm [thread:$0]  %s608, 512, %s606, %s594, 128, 128, 8
        $region36: #{tpu_custom_call.1} parent=27 // pred_fallthru
          _
      $region28: #{tpu_custom_call.1} parent=5 // pred_fallthru
        _
      %p614 = scmp.le.s32.totalorder 2, %s12
      // Predicated region
      $region37: #{tpu_custom_call.1} parent=5 // pred_check
        %p615 = pneg %p614
      $region38: #{tpu_custom_call.1} parent=5 // pred_check_branch
        %617 = sbr.rel (%p615) target = $region40
      $region39: #{tpu_custom_call.1} parent=5 // pred_region
        %s618 = ssub.s32 %s12, 2
        // Predicated region
        $region41: #{tpu_custom_call.1} parent=39 // pred_check
          %p619 = pneg %p83
        $region42: #{tpu_custom_call.1} parent=39 // pred_check_branch
          %621 = sbr.rel (%p619) target = $region44
        $region43: #{tpu_custom_call.1} parent=39 // pred_region
          %s622 = sand.u32 %s68, 1
          %s623 = scalar_lea.sflag [#allocation4], %s622
          %s624 = sand.u32 %s68, 1
          %s625 = smul.addr %s624, 32
          %s626 = scalar_lea.vmem [#allocation5], %s625
          %627 = dma.done %s623, 512
        $region44: #{tpu_custom_call.1} parent=39 // pred_fallthru
          _
      $region40: #{tpu_custom_call.1} parent=5 // pred_fallthru
        _
    $region6: #{tpu_custom_call.1} parent=1 // loop_footer
      %s16 = sadd.s32 1, %s12
    $region7: #{tpu_custom_call.1} parent=1 // loop_footer_branch
      %11 = sbr.rel target = $region3
    $region8: #{tpu_custom_call.1} parent=1 // loop_exit
      _
    %628 = vsyncpa [#allocation3], 1
    %s629 = scalar_lea.sflag [#allocation3], 1
    %630 = vsyncpa %s629, 1
    %631 = vsyncpa [#allocation4], 1
    %s632 = scalar_lea.sflag [#allocation4], 1
    %633 = vsyncpa %s632, 1

</llo_original>
